<compile_context>
chip_gen: v6e
topology: v6e:2x2x1
jax: 0.10.0
libtpu: 0.0.40
codegen_flags: <defaults>
</compile_context>

<pallas_src>
import jax
import jax.numpy as jnp
from jax import lax
from jax.experimental import pallas as pl
from jax.experimental.pallas import tpu as pltpu

_TRANS_B = (((1,), (1,)), ((), ()))   # contract on last dim of both: a @ b.T


def _mlp_kernel(x_ref, w1_ref, b1_ref, w2_ref, b2_ref, w3_ref, b3_ref, o_ref):
    # Layer 1: (H1, D) x (tb, D) -> (H1, tb); batch ends up on the lane axis.
    h1 = lax.dot_general(w1_ref[...], x_ref[...], _TRANS_B,
                         preferred_element_type=jnp.float32)
    h1 = jnp.maximum(h1 + b1_ref[...], 0.0)
    # Dropout(p) in eval mode == identity.

    # Layer 2: (H2, H1) @ (H1, tb) -> (H2, tb), f32 accumulation.
    h2 = jnp.dot(w2_ref[...], h1, preferred_element_type=jnp.float32)
    h2 = jnp.maximum(h2 + b2_ref[...], 0.0)
    # Dropout(p) in eval mode == identity.

    # Layer 3: (H2 -> 1) as VPU broadcast-multiply + XLU sublane reduce
    # (avoids a 1-row MXU matmul and the extra bf16 rounding of h2).
    out = jnp.sum(h2 * w3_ref[...], axis=0, keepdims=True)        # (1, tb)
    o_ref[...] = (out + b3_ref[...]).astype(o_ref.dtype)


def _round_up(v, m):
    return (v + m - 1) // m * m


def mlp_forward(x, params, *, block_b=4096):
    """x: (B, D) float32.

    params (PyTorch layout):
      w1: (H1, D), b1: (H1, 1), w2: (H2, H1), b2: (H2, 1), w3: (1, H2), b3: (1, 1)
    Returns (B, 1) float32, matching nn.Sequential(...)(x) in eval mode.
    """
    B, D = x.shape
    w1 = params["w1"].astype(jnp.float32)
    b1 = params["b1"].astype(jnp.float32)
    w2 = params["w2"].astype(jnp.float32)
    b2 = params["b2"].astype(jnp.float32)
    w3 = params["w3"].reshape(-1, 1).astype(jnp.float32)   # (H2, 1) column
    b3 = params["b3"].reshape(1, 1).astype(jnp.float32)

    # Batch tile: lane multiple of 128, big enough to amortise per-step
    # overhead, capped at ~ceil(B/2) so the "parallel" grid axis has >=2
    # steps whenever B allows (v7x: both TensorCores stay busy).
    if B <= 128:
        tb = B                                    # single full-extent block (legal)
    else:
        tb = min(block_b, _round_up(pl.cdiv(B, 2), 128))
    b_pad = _round_up(B, tb)

    if b_pad != B:                                # ragged tail only; common sizes skip this
        x = jnp.pad(x, ((0, b_pad - B), (0, 0)))

    grid = (b_pad // tb,)
    resident = lambda a: pl.BlockSpec(a.shape, lambda i: (0,) * a.ndim)

    out_t = pl.pallas_call(
        _mlp_kernel,
        out_shape=jax.ShapeDtypeStruct((1, b_pad), jnp.float32),
        grid=grid,
        in_specs=[
            pl.BlockSpec((tb, D), lambda i: (i, 0)),    # contiguous x row-block, pipelined
            resident(w1), resident(b1),                  # weights/biases stay VMEM-resident
            resident(w2), resident(b2),
            resident(w3), resident(b3),
        ],
        out_specs=pl.BlockSpec((1, tb), lambda i: (0, i)),   # lane-dense output store
        compiler_params=pltpu.CompilerParams(
            dimension_semantics=("parallel",)),              # batch axis over 2 TCs on v7x
    )(x, w1, b1, w2, b2, w3, b3)

    return out_t[0, :B].reshape(B, 1)


def init_params(key, input_dim, hidden1=64, hidden2=32):
    """Deterministic init mimicking nn.Linear default (uniform +/- 1/sqrt(fan_in)).

    Weights kept in PyTorch (out, in) layout; biases as (out, 1) columns so they
    broadcast along the lane (batch) axis inside the kernel.
    """
    ks = jax.random.split(key, 6)

    def linear(kw, kb, fan_in, fan_out):
        bound = 1.0 / jnp.sqrt(float(fan_in))
        w = jax.random.uniform(kw, (fan_out, fan_in), jnp.float32, -bound, bound)
        b = jax.random.uniform(kb, (fan_out, 1), jnp.float32, -bound, bound)
        return w, b

    w1, b1 = linear(ks[0], ks[1], input_dim, hidden1)
    w2, b2 = linear(ks[2], ks[3], hidden1, hidden2)
    w3, b3 = linear(ks[4], ks[5], hidden2, 1)
    return {"w1": w1, "b1": b1, "w2": w2, "b2": b2, "w3": w3, "b3": b3}


if __name__ == "__main__":
    key = jax.random.PRNGKey(0)
    k_x, k_p = jax.random.split(key)

    B, INPUT_DIM = 256, 16
    x = jax.random.normal(k_x, (B, INPUT_DIM), jnp.float32)
    params = init_params(k_p, INPUT_DIM, hidden1=64, hidden2=32)

    # Default block_b: tile logic caps at ceil(B/2) -> tb=128, grid=(2,)
    # (exercises the pipelined batch grid and the 2-TC split on v7x).
    out = mlp_forward(x, params)
    out = jax.block_until_ready(out)
    assert out.shape == (B, 1)

    # Pure-JAX f32 reference (same math as the eval-mode PyTorch module).
    hp = jax.lax.Precision.HIGHEST
    ref = jnp.maximum(jnp.dot(x, params["w1"].T, precision=hp) + params["b1"].T, 0.0)
    ref = jnp.maximum(jnp.dot(ref, params["w2"].T, precision=hp) + params["b2"].T, 0.0)
    ref = jnp.dot(ref, params["w3"].T, precision=hp) + params["b3"].T          # (B, 1)
    assert jnp.allclose(out, ref, atol=2e-3, rtol=2e-3), (
        float(jnp.max(jnp.abs(out - ref))))

    print("KERNEL_OK")
</pallas_src>

<mosaic_0001>
module attributes {stable_mosaic.version = 11 : i64} {
  func.func @_mlp_kernel(%arg0: i32, %arg1: memref<128x16xf32, #tpu.memory_space<vmem>>, %arg2: memref<64x16xf32, #tpu.memory_space<vmem>>, %arg3: memref<64x1xf32, #tpu.memory_space<vmem>>, %arg4: memref<32x64xf32, #tpu.memory_space<vmem>>, %arg5: memref<32x1xf32, #tpu.memory_space<vmem>>, %arg6: memref<32x1xf32, #tpu.memory_space<vmem>>, %arg7: memref<1x1xf32, #tpu.memory_space<vmem>>, %arg8: memref<1x128xf32, #tpu.memory_space<vmem>>) attributes {dimension_semantics = [#tpu.dimension_semantics<parallel>], iteration_bounds = array<i64: 2>, scalar_prefetch = 0 : i64, scratch_operands = 0 : i64, tpu.core_type = #tpu.core_type<tc>, window_params = [{transform_indices = @transform_0, window_bounds = array<i64: 128, 16>}, {pipeline_mode = #tpu.pipeline_mode<synchronous>, transform_indices = @transform_1, window_bounds = array<i64: 64, 16>}, {pipeline_mode = #tpu.pipeline_mode<synchronous>, transform_indices = @transform_2, window_bounds = array<i64: 64, 1>}, {pipeline_mode = #tpu.pipeline_mode<synchronous>, transform_indices = @transform_3, window_bounds = array<i64: 32, 64>}, {pipeline_mode = #tpu.pipeline_mode<synchronous>, transform_indices = @transform_4, window_bounds = array<i64: 32, 1>}, {pipeline_mode = #tpu.pipeline_mode<synchronous>, transform_indices = @transform_5, window_bounds = array<i64: 32, 1>}, {pipeline_mode = #tpu.pipeline_mode<synchronous>, transform_indices = @transform_6, window_bounds = array<i64: 1, 1>}, {transform_indices = @transform_7, window_bounds = array<i64: 1, 128>}]} {
    %c0 = arith.constant 0 : index
    %c0_0 = arith.constant 0 : index
    %0 = vector.load %arg2[%c0, %c0_0] : memref<64x16xf32, #tpu.memory_space<vmem>>, vector<64x16xf32>
    %c0_1 = arith.constant 0 : index
    %c0_2 = arith.constant 0 : index
    %1 = vector.load %arg1[%c0_1, %c0_2] : memref<128x16xf32, #tpu.memory_space<vmem>>, vector<128x16xf32>
    %cst = arith.constant dense<0.000000e+00> : vector<64x128xf32>
    %2 = tpu.matmul %0, %1, %cst {dimension_numbers = #tpu.dot_dimension_numbers<[1], [1], [0], [0], [0, 0, 1, 0], [], []>} : vector<64x16xf32>, vector<128x16xf32>, vector<64x128xf32> -> vector<64x128xf32>
    %c0_3 = arith.constant 0 : index
    %c0_4 = arith.constant 0 : index
    %3 = vector.load %arg3[%c0_3, %c0_4] : memref<64x1xf32, #tpu.memory_space<vmem>>, vector<64x1xf32>
    %4 = vector.broadcast %3 : vector<64x1xf32> to vector<64x128xf32>
    %5 = arith.addf %2, %4 : vector<64x128xf32>
    %cst_5 = arith.constant 0.000000e+00 : f32
    %6 = vector.broadcast %cst_5 : f32 to vector<64x128xf32>
    %7 = arith.maximumf %5, %6 : vector<64x128xf32>
    %c0_6 = arith.constant 0 : index
    %c0_7 = arith.constant 0 : index
    %8 = vector.load %arg4[%c0_6, %c0_7] : memref<32x64xf32, #tpu.memory_space<vmem>>, vector<32x64xf32>
    %cst_8 = arith.constant dense<0.000000e+00> : vector<32x128xf32>
    %9 = tpu.matmul %8, %7, %cst_8 {dimension_numbers = #tpu.dot_dimension_numbers<[1], [0], [0], [1], [0, 0, 1, 1], [], []>} : vector<32x64xf32>, vector<64x128xf32>, vector<32x128xf32> -> vector<32x128xf32>
    %c0_9 = arith.constant 0 : index
    %c0_10 = arith.constant 0 : index
    %10 = vector.load %arg5[%c0_9, %c0_10] : memref<32x1xf32, #tpu.memory_space<vmem>>, vector<32x1xf32>
    %11 = vector.broadcast %10 : vector<32x1xf32> to vector<32x128xf32>
    %12 = arith.addf %9, %11 : vector<32x128xf32>
    %cst_11 = arith.constant 0.000000e+00 : f32
    %13 = vector.broadcast %cst_11 : f32 to vector<32x128xf32>
    %14 = arith.maximumf %12, %13 : vector<32x128xf32>
    %c0_12 = arith.constant 0 : index
    %c0_13 = arith.constant 0 : index
    %15 = vector.load %arg6[%c0_12, %c0_13] : memref<32x1xf32, #tpu.memory_space<vmem>>, vector<32x1xf32>
    %16 = vector.broadcast %15 : vector<32x1xf32> to vector<32x128xf32>
    %17 = arith.mulf %14, %16 : vector<32x128xf32>
    %cst_14 = arith.constant dense<0.000000e+00> : vector<128xf32>
    %18 = vector.multi_reduction <add>, %17, %cst_14 [0] : vector<32x128xf32> to vector<128xf32>
    %19 = vector.shape_cast %18 : vector<128xf32> to vector<1x128xf32>
    %c0_15 = arith.constant 0 : index
    %c0_16 = arith.constant 0 : index
    %20 = vector.load %arg7[%c0_15, %c0_16] : memref<1x1xf32, #tpu.memory_space<vmem>>, vector<1x1xf32>
    %21 = vector.broadcast %20 : vector<1x1xf32> to vector<1x128xf32>
    %22 = arith.addf %19, %21 : vector<1x128xf32>
    %c0_17 = arith.constant 0 : index
    %c0_18 = arith.constant 0 : index
    %23 = vector.load %arg8[%c0_17, %c0_18] : memref<1x128xf32, #tpu.memory_space<vmem>>, vector<1x128xf32>
    tpu.vector_store %arg8[%c0_17, %c0_18], %22 {strides = array<i32>} : memref<1x128xf32, #tpu.memory_space<vmem>>, vector<1x128xf32>,
    return
  }
  func.func @transform_0(%arg0: i32) -> (i32, i32) {
    %c0_i32 = arith.constant 0 : i32
    %c0_i32_0 = arith.constant 0 : i32
    return %arg0, %c0_i32 : i32, i32
  }
  func.func @transform_1(%arg0: i32) -> (i32, i32) {
    %c0_i32 = arith.constant 0 : i32
    %c0_i32_0 = arith.constant 0 : i32
    %c0_i32_1 = arith.constant 0 : i32
    return %c0_i32, %c0_i32_0 : i32, i32
  }
  func.func @transform_2(%arg0: i32) -> (i32, i32) {
    %c0_i32 = arith.constant 0 : i32
    %c0_i32_0 = arith.constant 0 : i32
    %c0_i32_1 = arith.constant 0 : i32
    return %c0_i32, %c0_i32_0 : i32, i32
  }
  func.func @transform_3(%arg0: i32) -> (i32, i32) {
    %c0_i32 = arith.constant 0 : i32
    %c0_i32_0 = arith.constant 0 : i32
    %c0_i32_1 = arith.constant 0 : i32
    return %c0_i32, %c0_i32_0 : i32, i32
  }
  func.func @transform_4(%arg0: i32) -> (i32, i32) {
    %c0_i32 = arith.constant 0 : i32
    %c0_i32_0 = arith.constant 0 : i32
    %c0_i32_1 = arith.constant 0 : i32
    return %c0_i32, %c0_i32_0 : i32, i32
  }
  func.func @transform_5(%arg0: i32) -> (i32, i32) {
    %c0_i32 = arith.constant 0 : i32
    %c0_i32_0 = arith.constant 0 : i32
    %c0_i32_1 = arith.constant 0 : i32
    return %c0_i32, %c0_i32_0 : i32, i32
  }
  func.func @transform_6(%arg0: i32) -> (i32, i32) {
    %c0_i32 = arith.constant 0 : i32
    %c0_i32_0 = arith.constant 0 : i32
    %c0_i32_1 = arith.constant 0 : i32
    return %c0_i32, %c0_i32_0 : i32, i32
  }
  func.func @transform_7(%arg0: i32) -> (i32, i32) {
    %c0_i32 = arith.constant 0 : i32
    %c0_i32_0 = arith.constant 0 : i32
    return %c0_i32, %arg0 : i32, i32
  }
}

</mosaic_0001>

<llo_original>
// kernel: tpu_custom_call.1
$region0: #{tpu_custom_call.1}
  #allocation0 [shape = 'u32[]', space=smem, size = 0x4, offset = 0x4, fixed_abs, tag = 'smem constant byte address 0x4 - core index']
  #allocation1 [shape = 'u32[144,128]{1,0:T(1,128)}', space=vmem, size = 0x12000, scoped, tag = 'internal scratch']
  #allocation2 [shape = 'f32[1,1]{1,0:T(1,128)S(1)}', space=vmem, size = 0x200, scoped, tag = 'scoped memory for tpu_custom_call.1']
  %s0 = inlined_call_operand.vmem [shape: f32[256,16], index: 0, kind: input, shape index: {}]
  %s1 = inlined_call_operand.vmem [shape: f32[64,16], index: 1, kind: input, shape index: {}]
  %s2 = inlined_call_operand.vmem [shape: f32[64,1], index: 2, kind: input, shape index: {}]
  %s3 = inlined_call_operand.vmem [shape: f32[32,64], index: 3, kind: input, shape index: {}]
  %s4 = inlined_call_operand.vmem [shape: f32[32,1], index: 4, kind: input, shape index: {}]
  %s5 = inlined_call_operand.vmem [shape: f32[32,1], index: 5, kind: input, shape index: {}]
  %s6 = inlined_call_operand.<no memory space> [shape: f32[1,1], index: 6, kind: input, shape index: {}]
  %s7 = inlined_call_operand.hbm [shape: f32[1,256], index: 7, kind: output, shape index: {}]
  %s8 = sld [smem:[#allocation0]]
  $region61: #{tpu_custom_call.1} parent=0
    _
  %s10 = ssub.s32 1, %s8
  %s11 = scalar_select 0, %s10, %s8
  %v12 = vstv %s6
  %13 = vst [vmem:[#allocation2] sm:$0x1] %v12
  $region1: #{tpu_custom_call.1} parent=0
    #allocation3 [shape = 'u8[1024]{0}', space=vmem, size = 0x400, scoped, tag = 'output window, operand 0']
    #allocation4 [shape = 's32[2]{0}', space=sflag, size = 0x8, scoped, tag = 'scoped memory for tpu_custom_call.1']
    %14 = vsyncpa [#allocation4], 0
    %s15 = scalar_lea.sflag [#allocation4], 1
    %16 = vsyncpa %s15, 0
    loop: start=0, step=1, limit=4
    $region2: #{tpu_custom_call.1} parent=1 // loop_pre_header
      _
    $region3: #{tpu_custom_call.1} parent=1 // loop_header
      %s18 = sphi 0, %s22
      %p19 = scmp.ge.s32.totalorder %s18, 4
      %s28 = sphi 0, %s30
      %s31 = sphi 0, %s28
      %s32 = sphi 0, %s31
      %s48 = sphi 0, %s32
      %s52 = sphi 0, %s52
      %s54 = sphi 0, %s52
      %s55 = sphi 0, %s54
      %s69 = sphi 0, %s55
      %s73 = sphi 0, %s73
      %s75 = sphi 0, %s73
      %s76 = sphi 0, %s75
      %s90 = sphi 0, %s76
      %s94 = sphi 0, %s94
      %s96 = sphi 0, %s94
      %s97 = sphi 0, %s96
      %s111 = sphi 0, %s97
      %s115 = sphi 0, %s115
      %s117 = sphi 0, %s115
      %s118 = sphi 0, %s117
      %s132 = sphi 0, %s118
      %s136 = sphi 0, %s136
      %s138 = sphi 0, %s136
      %s139 = sphi 0, %s138
      %s153 = sphi 0, %s139
      %s157 = sphi 0, %s157
      %s159 = sphi 0, %s157
      %s160 = sphi 0, %s159
      %s174 = sphi 0, %s160
      %s180 = sphi 0, %s182
      %s183 = sphi 0, %s180
      %s184 = sphi 0, %s183
      %s200 = sphi 0, %s184
    $region4: #{tpu_custom_call.1} parent=1 // loop_header_branch
      %21 = sbr.rel (%p19) target = $region8
    $region5: #{tpu_custom_call.1} parent=1 // loop_body
      %s23 = ssub.s32 %s18, 1
      %s24 = ssub.s32 %s18, 2
      %s25 = sadd.s32 %s18, 1
      %s26 = ssub.s32 %s18, %s25
      %p27 = scmp.eq.s32.totalorder %s26, 0
      %s29 = sadd.s32 %s28, 1
      %s30 = scalar_select %p27, %s28, %s29
      %p33 = pneg %p27
      %p34 = scmp.eq.s32.totalorder %s18, 1
      %p35 = por %p33, %p34
      %p36 = scmp.ne.s32.totalorder %s28, %s31
      %p37 = scmp.eq.s32.totalorder %s18, 0
      %p38 = por %p36, %p37
      %p39 = scmp.ne.s32.totalorder %s28, %s31
      %p40 = scmp.eq.s32.totalorder %s23, 1
      %p41 = por %p39, %p40
      %p42 = scmp.ne.s32.totalorder %s31, %s32
      %p43 = scmp.eq.s32.totalorder %s23, 0
      %p44 = por %p42, %p43
      %p45 = scmp.ne.s32.totalorder %s31, %s32
      %p46 = scmp.eq.s32.totalorder %s24, 1
      %p47 = por %p45, %p46
      %p49 = scmp.ne.s32.totalorder %s32, %s48
      %p50 = scmp.eq.s32.totalorder %s24, 0
      %p51 = por %p49, %p50
      %s53 = sadd.s32 %s52, 1
      %p56 = scmp.eq.s32.totalorder %s18, 1
      %p57 = scmp.ne.s32.totalorder %s52, %s54
      %p58 = scmp.eq.s32.totalorder %s18, 0
      %p59 = por %p57, %p58
      %p60 = scmp.ne.s32.totalorder %s52, %s54
      %p61 = scmp.eq.s32.totalorder %s23, 1
      %p62 = por %p60, %p61
      %p63 = scmp.ne.s32.totalorder %s54, %s55
      %p64 = scmp.eq.s32.totalorder %s23, 0
      %p65 = por %p63, %p64
      %p66 = scmp.ne.s32.totalorder %s54, %s55
      %p67 = scmp.eq.s32.totalorder %s24, 1
      %p68 = por %p66, %p67
      %p70 = scmp.ne.s32.totalorder %s55, %s69
      %p71 = scmp.eq.s32.totalorder %s24, 0
      %p72 = por %p70, %p71
      %s74 = sadd.s32 %s73, 1
      %p77 = scmp.eq.s32.totalorder %s18, 1
      %p78 = scmp.ne.s32.totalorder %s73, %s75
      %p79 = scmp.eq.s32.totalorder %s18, 0
      %p80 = por %p78, %p79
      %p81 = scmp.ne.s32.totalorder %s73, %s75
      %p82 = scmp.eq.s32.totalorder %s23, 1
      %p83 = por %p81, %p82
      %p84 = scmp.ne.s32.totalorder %s75, %s76
      %p85 = scmp.eq.s32.totalorder %s23, 0
      %p86 = por %p84, %p85
      %p87 = scmp.ne.s32.totalorder %s75, %s76
      %p88 = scmp.eq.s32.totalorder %s24, 1
      %p89 = por %p87, %p88
      %p91 = scmp.ne.s32.totalorder %s76, %s90
      %p92 = scmp.eq.s32.totalorder %s24, 0
      %p93 = por %p91, %p92
      %s95 = sadd.s32 %s94, 1
      %p98 = scmp.eq.s32.totalorder %s18, 1
      %p99 = scmp.ne.s32.totalorder %s94, %s96
      %p100 = scmp.eq.s32.totalorder %s18, 0
      %p101 = por %p99, %p100
      %p102 = scmp.ne.s32.totalorder %s94, %s96
      %p103 = scmp.eq.s32.totalorder %s23, 1
      %p104 = por %p102, %p103
      %p105 = scmp.ne.s32.totalorder %s96, %s97
      %p106 = scmp.eq.s32.totalorder %s23, 0
      %p107 = por %p105, %p106
      %p108 = scmp.ne.s32.totalorder %s96, %s97
      %p109 = scmp.eq.s32.totalorder %s24, 1
      %p110 = por %p108, %p109
      %p112 = scmp.ne.s32.totalorder %s97, %s111
      %p113 = scmp.eq.s32.totalorder %s24, 0
      %p114 = por %p112, %p113
      %s116 = sadd.s32 %s115, 1
      %p119 = scmp.eq.s32.totalorder %s18, 1
      %p120 = scmp.ne.s32.totalorder %s115, %s117
      %p121 = scmp.eq.s32.totalorder %s18, 0
      %p122 = por %p120, %p121
      %p123 = scmp.ne.s32.totalorder %s115, %s117
      %p124 = scmp.eq.s32.totalorder %s23, 1
      %p125 = por %p123, %p124
      %p126 = scmp.ne.s32.totalorder %s117, %s118
      %p127 = scmp.eq.s32.totalorder %s23, 0
      %p128 = por %p126, %p127
      %p129 = scmp.ne.s32.totalorder %s117, %s118
      %p130 = scmp.eq.s32.totalorder %s24, 1
      %p131 = por %p129, %p130
      %p133 = scmp.ne.s32.totalorder %s118, %s132
      %p134 = scmp.eq.s32.totalorder %s24, 0
      %p135 = por %p133, %p134
      %s137 = sadd.s32 %s136, 1
      %p140 = scmp.eq.s32.totalorder %s18, 1
      %p141 = scmp.ne.s32.totalorder %s136, %s138
      %p142 = scmp.eq.s32.totalorder %s18, 0
      %p143 = por %p141, %p142
      %p144 = scmp.ne.s32.totalorder %s136, %s138
      %p145 = scmp.eq.s32.totalorder %s23, 1
      %p146 = por %p144, %p145
      %p147 = scmp.ne.s32.totalorder %s138, %s139
      %p148 = scmp.eq.s32.totalorder %s23, 0
      %p149 = por %p147, %p148
      %p150 = scmp.ne.s32.totalorder %s138, %s139
      %p151 = scmp.eq.s32.totalorder %s24, 1
      %p152 = por %p150, %p151
      %p154 = scmp.ne.s32.totalorder %s139, %s153
      %p155 = scmp.eq.s32.totalorder %s24, 0
      %p156 = por %p154, %p155
      %s158 = sadd.s32 %s157, 1
      %p161 = scmp.eq.s32.totalorder %s18, 1
      %p162 = scmp.ne.s32.totalorder %s157, %s159
      %p163 = scmp.eq.s32.totalorder %s18, 0
      %p164 = por %p162, %p163
      %p165 = scmp.ne.s32.totalorder %s157, %s159
      %p166 = scmp.eq.s32.totalorder %s23, 1
      %p167 = por %p165, %p166
      %p168 = scmp.ne.s32.totalorder %s159, %s160
      %p169 = scmp.eq.s32.totalorder %s23, 0
      %p170 = por %p168, %p169
      %p171 = scmp.ne.s32.totalorder %s159, %s160
      %p172 = scmp.eq.s32.totalorder %s24, 1
      %p173 = por %p171, %p172
      %p175 = scmp.ne.s32.totalorder %s160, %s174
      %p176 = scmp.eq.s32.totalorder %s24, 0
      %p177 = por %p175, %p176
      %s178 = ssub.s32 %s18, %s25
      %p179 = scmp.eq.s32.totalorder %s178, 0
      %s181 = sadd.s32 %s180, 1
      %s182 = scalar_select %p179, %s180, %s181
      %p185 = pneg %p179
      %p186 = scmp.eq.s32.totalorder %s18, 1
      %p187 = por %p185, %p186
      %p188 = scmp.ne.s32.totalorder %s180, %s183
      %p189 = scmp.eq.s32.totalorder %s18, 0
      %p190 = por %p188, %p189
      %p191 = scmp.ne.s32.totalorder %s180, %s183
      %p192 = scmp.eq.s32.totalorder %s23, 1
      %p193 = por %p191, %p192
      %p194 = scmp.ne.s32.totalorder %s183, %s184
      %p195 = scmp.eq.s32.totalorder %s23, 0
      %p196 = por %p194, %p195
      %p197 = scmp.ne.s32.totalorder %s183, %s184
      %p198 = scmp.eq.s32.totalorder %s24, 1
      %p199 = por %p197, %p198
      %p201 = scmp.ne.s32.totalorder %s184, %s200
      %p202 = scmp.eq.s32.totalorder %s24, 0
      %p203 = por %p201, %p202
      %p204 = scmp.le.s32.totalorder 1, %s18
      %p205 = scmp.lt.s32.totalorder %s18, 3
      %p206 = pnand %p204, %p205
      %p207 = pneg %p206
      // Predicated region
      $region9: #{tpu_custom_call.1} parent=5 // pred_check
        _
      $region10: #{tpu_custom_call.1} parent=5 // pred_check_branch
        %209 = sbr.rel (%p206) target = $region12
      $region11: #{tpu_custom_call.1} parent=5 // pred_region
        %s210 = ssub.s32 %s18, 1
        // Predicated region
        $region13: #{tpu_custom_call.1} parent=11 // pred_check
          %p211 = pneg %p65
        $region14: #{tpu_custom_call.1} parent=11 // pred_check_branch
          %213 = sbr.rel (%p211) target = $region16
        $region15: #{tpu_custom_call.1} parent=11 // pred_region
          _
        $region16: #{tpu_custom_call.1} parent=11 // pred_fallthru
          _
        // Predicated region
        $region17: #{tpu_custom_call.1} parent=11 // pred_check
          %p214 = pneg %p86
        $region18: #{tpu_custom_call.1} parent=11 // pred_check_branch
          %216 = sbr.rel (%p214) target = $region20
        $region19: #{tpu_custom_call.1} parent=11 // pred_region
          _
        $region20: #{tpu_custom_call.1} parent=11 // pred_fallthru
          _
        // Predicated region
        $region21: #{tpu_custom_call.1} parent=11 // pred_check
          %p217 = pneg %p107
        $region22: #{tpu_custom_call.1} parent=11 // pred_check_branch
          %219 = sbr.rel (%p217) target = $region24
        $region23: #{tpu_custom_call.1} parent=11 // pred_region
          _
        $region24: #{tpu_custom_call.1} parent=11 // pred_fallthru
          _
        // Predicated region
        $region25: #{tpu_custom_call.1} parent=11 // pred_check
          %p220 = pneg %p128
        $region26: #{tpu_custom_call.1} parent=11 // pred_check_branch
          %222 = sbr.rel (%p220) target = $region28
        $region27: #{tpu_custom_call.1} parent=11 // pred_region
          _
        $region28: #{tpu_custom_call.1} parent=11 // pred_fallthru
          _
        // Predicated region
        $region29: #{tpu_custom_call.1} parent=11 // pred_check
          %p223 = pneg %p149
        $region30: #{tpu_custom_call.1} parent=11 // pred_check_branch
          %225 = sbr.rel (%p223) target = $region32
        $region31: #{tpu_custom_call.1} parent=11 // pred_region
          _
        $region32: #{tpu_custom_call.1} parent=11 // pred_fallthru
          _
        // Predicated region
        $region33: #{tpu_custom_call.1} parent=11 // pred_check
          %p226 = pneg %p170
        $region34: #{tpu_custom_call.1} parent=11 // pred_check_branch
          %228 = sbr.rel (%p226) target = $region36
        $region35: #{tpu_custom_call.1} parent=11 // pred_region
          _
        $region36: #{tpu_custom_call.1} parent=11 // pred_fallthru
          _
      $region12: #{tpu_custom_call.1} parent=5 // pred_fallthru
        _
      %p229 = scmp.lt.s32.totalorder %s18, 2
      // Predicated region
      $region37: #{tpu_custom_call.1} parent=5 // pred_check
        %p230 = pneg %p229
      $region38: #{tpu_custom_call.1} parent=5 // pred_check_branch
        %232 = sbr.rel (%p230) target = $region40
      $region39: #{tpu_custom_call.1} parent=5 // pred_region
        // Predicated region
        $region41: #{tpu_custom_call.1} parent=39 // pred_check
          %p233 = pneg %p38
        $region42: #{tpu_custom_call.1} parent=39 // pred_check_branch
          %235 = sbr.rel (%p233) target = $region44
        $region43: #{tpu_custom_call.1} parent=39 // pred_region
          %s236 = smul.u32 16, %s18
          %p237 = scmp.lt.s32.totalorder %s236, 31
          %s238 = scalar_select %p237, %s236, 31
          %s239 = smul.addr %s238, 8
          %s240 = scalar_lea.vmem %s0, %s239
          %s241 = smul.u32 16, %s18
        $region44: #{tpu_custom_call.1} parent=39 // pred_fallthru
          _
      $region40: #{tpu_custom_call.1} parent=5 // pred_fallthru
        _
      %p242 = scmp.le.s32.totalorder 1, %s18
      %p243 = scmp.lt.s32.totalorder %s18, 3
      %p244 = pnand %p242, %p243
      %p245 = pneg %p244
      // Predicated region
      $region45: #{tpu_custom_call.1} parent=5 // pred_check
        _
      $region46: #{tpu_custom_call.1} parent=5 // pred_check_branch
        %247 = sbr.rel (%p244) target = $region48
      $region47: #{tpu_custom_call.1} parent=5 // pred_region
        %s248 = ssub.s32 %s18, 1
        %s249 = smul.u32 16, %s23
        %p250 = scmp.lt.s32.totalorder %s249, 31
        %s251 = scalar_select %p250, %s249, 31
        %s252 = smul.addr %s251, 8
        %s253 = scalar_lea.vmem %s0, %s252
        %p254 = pneg %p44
        %p255 = pneg %p41
        %p256 = pneg %p65
        %p257 = pneg %p62
        %p258 = pneg %p86
        %p259 = pneg %p83
        %p260 = pneg %p107
        %p261 = pneg %p104
        %p262 = pneg %p128
        %p263 = pneg %p125
        %p264 = pneg %p149
        %p265 = pneg %p146
        %p266 = pneg %p170
        %p267 = pneg %p167
        %p268 = pneg %p196
        %p269 = pneg %p193
        %s270 = sand.u32 %s183, 1
        %s271 = scalar_lea.sflag [#allocation4], %s270
        %s272 = sand.u32 %s183, 1
        %s273 = scalar_lea.vmem [#allocation3], %s272
        %s274 = smul.u32 16, %s23
        %p275 = scmp.lt.s32.totalorder %s274, 31
        %s276 = scalar_select %p275, %s274, 31
        %s277 = smul.addr %s276, 8
        %s278 = scalar_lea.vmem %s0, %s277
        %s279 = smul.u32 16, %s23
        %v280 = vld [vmem:[%s1] sm:$0xff]
        %v281 = vld [vmem:[%s1 + $0x8] sm:$0xff]
        %v282 = vld [vmem:[%s1 + $0x10] sm:$0xff]
        %v283 = vld [vmem:[%s1 + $0x18] sm:$0xff]
        %v284 = vld [vmem:[%s1 + $0x20] sm:$0xff]
        %v285 = vld [vmem:[%s1 + $0x28] sm:$0xff]
        %v286 = vld [vmem:[%s1 + $0x30] sm:$0xff]
        %v287 = vld [vmem:[%s1 + $0x38] sm:$0xff]
        %v288 = vld [vmem:[%s278] sm:$0xff]
        %v289 = vld [vmem:[%s278 + $0x8] sm:$0xff]
        %v290 = vld [vmem:[%s278 + $0x10] sm:$0xff]
        %v291 = vld [vmem:[%s278 + $0x18] sm:$0xff]
        %v292 = vld [vmem:[%s278 + $0x20] sm:$0xff]
        %v293 = vld [vmem:[%s278 + $0x28] sm:$0xff]
        %v294 = vld [vmem:[%s278 + $0x30] sm:$0xff]
        %v295 = vld [vmem:[%s278 + $0x38] sm:$0xff]
        %v296 = vld [vmem:[%s278 + $0x40] sm:$0xff]
        %v297 = vld [vmem:[%s278 + $0x48] sm:$0xff]
        %v298 = vld [vmem:[%s278 + $0x50] sm:$0xff]
        %v299 = vld [vmem:[%s278 + $0x58] sm:$0xff]
        %v300 = vld [vmem:[%s278 + $0x60] sm:$0xff]
        %v301 = vld [vmem:[%s278 + $0x68] sm:$0xff]
        %v302 = vld [vmem:[%s278 + $0x70] sm:$0xff]
        %v303 = vld [vmem:[%s278 + $0x78] sm:$0xff]
        %v304 = vld [vmem:[%s2] sm:$0xff]
        %v305 = vld [vmem:[%s2 + $0x8] sm:$0xff]
        %v306 = vld [vmem:[%s2 + $0x10] sm:$0xff]
        %v307 = vld [vmem:[%s2 + $0x18] sm:$0xff]
        %v308 = vld [vmem:[%s2 + $0x20] sm:$0xff]
        %v309 = vld [vmem:[%s2 + $0x28] sm:$0xff]
        %v310 = vld [vmem:[%s2 + $0x30] sm:$0xff]
        %v311 = vld [vmem:[%s2 + $0x38] sm:$0xff]
        %313 = vset.pattern.permute.xlu0 0
        %314 = vperm.xlu0 %313, %v304
        %v315 = vpop.permute.xlu0 %314
        %318 = vset.pattern.permute.xlu0 0
        %319 = vperm.xlu0 %318, %v305
        %v320 = vpop.permute.xlu0 %319
        %323 = vset.pattern.permute.xlu0 0
        %324 = vperm.xlu0 %323, %v306
        %v325 = vpop.permute.xlu0 %324
        %328 = vset.pattern.permute.xlu0 0
        %329 = vperm.xlu0 %328, %v307
        %v330 = vpop.permute.xlu0 %329
        %333 = vset.pattern.permute.xlu0 0
        %334 = vperm.xlu0 %333, %v308
        %v335 = vpop.permute.xlu0 %334
        %338 = vset.pattern.permute.xlu0 0
        %339 = vperm.xlu0 %338, %v309
        %v340 = vpop.permute.xlu0 %339
        %343 = vset.pattern.permute.xlu0 0
        %344 = vperm.xlu0 %343, %v310
        %v345 = vpop.permute.xlu0 %344
        %348 = vset.pattern.permute.xlu0 0
        %349 = vperm.xlu0 %348, %v311
        %v350 = vpop.permute.xlu0 %349
        %vm352 = vcmask 130048
        %v354 = vsel %vm352, %v280, 0
        %v357 = vsel %vm352, %v281, 0
        %v360 = vsel %vm352, %v282, 0
        %v363 = vsel %vm352, %v283, 0
        %v366 = vsel %vm352, %v284, 0
        %v369 = vsel %vm352, %v285, 0
        %v372 = vsel %vm352, %v286, 0
        %v375 = vsel %vm352, %v287, 0
        %v378 = vsel %vm352, %v288, 0
        %v381 = vsel %vm352, %v289, 0
        %v384 = vsel %vm352, %v290, 0
        %v387 = vsel %vm352, %v291, 0
        %v390 = vsel %vm352, %v292, 0
        %v393 = vsel %vm352, %v293, 0
        %v396 = vsel %vm352, %v294, 0
        %v399 = vsel %vm352, %v295, 0
        %v402 = vsel %vm352, %v296, 0
        %v405 = vsel %vm352, %v297, 0
        %v408 = vsel %vm352, %v298, 0
        %v411 = vsel %vm352, %v299, 0
        %v414 = vsel %vm352, %v300, 0
        %v417 = vsel %vm352, %v301, 0
        %v420 = vsel %vm352, %v302, 0
        %v423 = vsel %vm352, %v303, 0
        %425 = vmatprep.subr.mxu0 0.0
        %426 = vmatpush1.xpose.msra.mxu0 %v423
        %427 = vmatprep.subr.mxu0 0.0
        %428 = vmatpush1.xpose.msra.mxu0 %v420
        %429 = vmatprep.subr.mxu0 0.0
        %430 = vmatpush1.xpose.msra.mxu0 %v417
        %431 = vmatprep.subr.mxu0 0.0
        %432 = vmatpush1.xpose.msra.mxu0 %v414
        %433 = vmatprep.subr.mxu0 0.0
        %434 = vmatpush1.xpose.msra.mxu0 %v411
        %435 = vmatprep.subr.mxu0 0.0
        %436 = vmatpush1.xpose.msra.mxu0 %v408
        %437 = vmatprep.subr.mxu0 0.0
        %438 = vmatpush1.xpose.msra.mxu0 %v405
        %439 = vmatprep.subr.mxu0 0.0
        %440 = vmatpush1.xpose.msra.mxu0 %v402
        %441 = vmatprep.subr.mxu0 0.0
        %442 = vmatpush1.xpose.msra.mxu0 %v399
        %443 = vmatprep.subr.mxu0 0.0
        %444 = vmatpush1.xpose.msra.mxu0 %v396
        %445 = vmatprep.subr.mxu0 0.0
        %446 = vmatpush1.xpose.msra.mxu0 %v393
        %447 = vmatprep.subr.mxu0 0.0
        %448 = vmatpush1.xpose.msra.mxu0 %v390
        %449 = vmatprep.subr.mxu0 0.0
        %450 = vmatpush1.xpose.msra.mxu0 %v387
        %451 = vmatprep.subr.mxu0 0.0
        %452 = vmatpush1.xpose.msra.mxu0 %v384
        %453 = vmatprep.subr.mxu0 0.0
        %454 = vmatpush1.xpose.msra.mxu0 %v381
        %455 = vmatprep.subr.mxu0 0.0
        %456 = vmatpush1.xpose.msra.mxu0 %v378
        %457 = vmatprep.subr.mxu0 0.0
        %458 = vmatpush2.xpose.msra.mxu0 0.0
        %459 = vmatprep.subr.mxu0 0.0
        %460 = vmatpush2.xpose.msra.mxu0 0.0
        %461 = vmatprep.subr.mxu0 0.0
        %462 = vmatpush2.xpose.msra.mxu0 0.0
        %463 = vmatprep.subr.mxu0 0.0
        %464 = vmatpush2.xpose.msra.mxu0 0.0
        %465 = vmatprep.subr.mxu0 0.0
        %466 = vmatpush2.xpose.msra.mxu0 0.0
        %467 = vmatprep.subr.mxu0 0.0
        %468 = vmatpush2.xpose.msra.mxu0 0.0
        %469 = vmatprep.subr.mxu0 0.0
        %470 = vmatpush2.xpose.msra.mxu0 0.0
        %471 = vmatprep.subr.mxu0 0.0
        %472 = vmatpush2.xpose.msra.mxu0 0.0
        %473 = vmatprep.subr.mxu0 0.0
        %474 = vmatpush2.xpose.msra.mxu0 0.0
        %475 = vmatprep.subr.mxu0 0.0
        %476 = vmatpush2.xpose.msra.mxu0 0.0
        %477 = vmatprep.subr.mxu0 0.0
        %478 = vmatpush2.xpose.msra.mxu0 0.0
        %479 = vmatprep.subr.mxu0 0.0
        %480 = vmatpush2.xpose.msra.mxu0 0.0
        %481 = vmatprep.subr.mxu0 0.0
        %482 = vmatpush2.xpose.msra.mxu0 0.0
        %483 = vmatprep.subr.mxu0 0.0
        %484 = vmatpush2.xpose.msra.mxu0 0.0
        %485 = vmatprep.subr.mxu0 0.0
        %486 = vmatpush2.xpose.msra.mxu0 0.0
        %487 = vmatprep.subr.mxu0 0.0
        %488 = vmatpush2.xpose.msra.mxu0 0.0
        %489 = vmatprep.mubr.f32.mxu0 0.0
        %490 = vmatmul.mubr.f32.gmra.mxu0 %v354
        %v491 = vpop.f32.mrf.mxu0
        %v492 = vadd.f32 %v315, %v491
        %v493 = vpop.f32.mrf.mxu0
        %494 = vmatprep.mubr.f32.mxu0 0.0
        %495 = vmatmul.mubr.f32.gmra.mxu0 %v357
        %v496 = vpop.f32.mrf.mxu0
        %v497 = vadd.f32 %v320, %v496
        %v498 = vpop.f32.mrf.mxu0
        %499 = vmatprep.mubr.f32.mxu0 0.0
        %500 = vmatmul.mubr.f32.gmra.mxu0 %v360
        %v501 = vpop.f32.mrf.mxu0
        %v502 = vadd.f32 %v325, %v501
        %v503 = vpop.f32.mrf.mxu0
        %504 = vmatprep.mubr.f32.mxu0 0.0
        %505 = vmatmul.mubr.f32.gmra.mxu0 %v363
        %v506 = vpop.f32.mrf.mxu0
        %v507 = vadd.f32 %v330, %v506
        %v508 = vpop.f32.mrf.mxu0
        %509 = vmatprep.mubr.f32.mxu0 0.0
        %510 = vmatmul.mubr.f32.gmra.mxu0 %v366
        %v511 = vpop.f32.mrf.mxu0
        %v512 = vadd.f32 %v335, %v511
        %v513 = vpop.f32.mrf.mxu0
        %514 = vmatprep.mubr.f32.mxu0 0.0
        %515 = vmatmul.mubr.f32.gmra.mxu0 %v369
        %v516 = vpop.f32.mrf.mxu0
        %v517 = vadd.f32 %v340, %v516
        %v518 = vpop.f32.mrf.mxu0
        %519 = vmatprep.mubr.f32.mxu0 0.0
        %520 = vmatmul.mubr.f32.gmra.mxu0 %v372
        %v521 = vpop.f32.mrf.mxu0
        %v522 = vadd.f32 %v345, %v521
        %v523 = vpop.f32.mrf.mxu0
        %524 = vmatprep.mubr.f32.mxu0 0.0
        %525 = vmatmul.mubr.f32.gmra.mxu0 %v375
        %v526 = vpop.f32.mrf.mxu0
        %v527 = vadd.f32 %v350, %v526
        %v528 = vpop.f32.mrf.mxu0
        %529 = vdwg.mxu0
        %v530 = vmax.f32 %v492, 0.0
        %v531 = vmax.f32 %v497, 0.0
        %v532 = vmax.f32 %v502, 0.0
        %v533 = vmax.f32 %v507, 0.0
        %v534 = vmax.f32 %v512, 0.0
        %v535 = vmax.f32 %v517, 0.0
        %v536 = vmax.f32 %v522, 0.0
        %v537 = vmax.f32 %v527, 0.0
        %v538 = vld [vmem:[%s3] sm:$0xff]
        %v539 = vld [vmem:[%s3 + $0x8] sm:$0xff]
        %v540 = vld [vmem:[%s3 + $0x10] sm:$0xff]
        %v541 = vld [vmem:[%s3 + $0x18] sm:$0xff]
        %v542 = vld [vmem:[%s4] sm:$0xff]
        %v543 = vld [vmem:[%s4 + $0x8] sm:$0xff]
        %v544 = vld [vmem:[%s4 + $0x10] sm:$0xff]
        %v545 = vld [vmem:[%s4 + $0x18] sm:$0xff]
        %547 = vset.pattern.permute.xlu0 0
        %548 = vperm.xlu0 %547, %v542
        %v549 = vpop.permute.xlu0 %548
        %552 = vset.pattern.permute.xlu0 0
        %553 = vperm.xlu0 %552, %v543
        %v554 = vpop.permute.xlu0 %553
        %557 = vset.pattern.permute.xlu0 0
        %558 = vperm.xlu0 %557, %v544
        %v559 = vpop.permute.xlu0 %558
        %562 = vset.pattern.permute.xlu0 0
        %563 = vperm.xlu0 %562, %v545
        %v564 = vpop.permute.xlu0 %563
        %vm566 = vcmask 523264
        %v568 = vsel %vm566, %v538, 0
        %v571 = vsel %vm566, %v539, 0
        %v574 = vsel %vm566, %v540, 0
        %v577 = vsel %vm566, %v541, 0
        %579 = vmatprep.subr.mxu0 0.0
        %580 = vmatpush1.msra.mxu0 0.0
        %581 = vmatprep.subr.mxu0 0.0
        %582 = vmatpush1.msra.mxu0 0.0
        %583 = vmatprep.subr.mxu0 0.0
        %584 = vmatpush1.msra.mxu0 0.0
        %585 = vmatprep.subr.mxu0 0.0
        %586 = vmatpush1.msra.mxu0 0.0
        %587 = vmatprep.subr.mxu0 0.0
        %588 = vmatpush1.msra.mxu0 0.0
        %589 = vmatprep.subr.mxu0 0.0
        %590 = vmatpush1.msra.mxu0 0.0
        %591 = vmatprep.subr.mxu0 0.0
        %592 = vmatpush1.msra.mxu0 0.0
        %593 = vmatprep.subr.mxu0 0.0
        %594 = vmatpush1.msra.mxu0 0.0
        %595 = vmatprep.subr.mxu0 0.0
        %596 = vmatpush1.msra.mxu0 %v537
        %597 = vmatprep.subr.mxu0 0.0
        %598 = vmatpush1.msra.mxu0 %v536
        %599 = vmatprep.subr.mxu0 0.0
        %600 = vmatpush1.msra.mxu0 %v535
        %601 = vmatprep.subr.mxu0 0.0
        %602 = vmatpush1.msra.mxu0 %v534
        %603 = vmatprep.subr.mxu0 0.0
        %604 = vmatpush1.msra.mxu0 %v533
        %605 = vmatprep.subr.mxu0 0.0
        %606 = vmatpush1.msra.mxu0 %v532
        %607 = vmatprep.subr.mxu0 0.0
        %608 = vmatpush1.msra.mxu0 %v531
        %609 = vmatprep.subr.mxu0 0.0
        %610 = vmatpush1.msra.mxu0 %v530
        %611 = vmatprep.subr.mxu0 0.0
        %612 = vmatpush2.msra.mxu0 0.0
        %613 = vmatprep.subr.mxu0 0.0
        %614 = vmatpush2.msra.mxu0 0.0
        %615 = vmatprep.subr.mxu0 0.0
        %616 = vmatpush2.msra.mxu0 0.0
        %617 = vmatprep.subr.mxu0 0.0
        %618 = vmatpush2.msra.mxu0 0.0
        %619 = vmatprep.subr.mxu0 0.0
        %620 = vmatpush2.msra.mxu0 0.0
        %621 = vmatprep.subr.mxu0 0.0
        %622 = vmatpush2.msra.mxu0 0.0
        %623 = vmatprep.subr.mxu0 0.0
        %624 = vmatpush2.msra.mxu0 0.0
        %625 = vmatprep.subr.mxu0 0.0
        %626 = vmatpush2.msra.mxu0 0.0
        %627 = vmatprep.subr.mxu0 0.0
        %628 = vmatpush2.msra.mxu0 0.0
        %629 = vmatprep.subr.mxu0 0.0
        %630 = vmatpush2.msra.mxu0 0.0
        %631 = vmatprep.subr.mxu0 0.0
        %632 = vmatpush2.msra.mxu0 0.0
        %633 = vmatprep.subr.mxu0 0.0
        %634 = vmatpush2.msra.mxu0 0.0
        %635 = vmatprep.subr.mxu0 0.0
        %636 = vmatpush2.msra.mxu0 0.0
        %637 = vmatprep.subr.mxu0 0.0
        %638 = vmatpush2.msra.mxu0 0.0
        %639 = vmatprep.subr.mxu0 0.0
        %640 = vmatpush2.msra.mxu0 0.0
        %641 = vmatprep.subr.mxu0 0.0
        %642 = vmatpush2.msra.mxu0 0.0
        %643 = vmatprep.mubr.f32.mxu0 0.0
        %644 = vmatmul.mubr.f32.gmra.mxu0 %v568
        %v645 = vpop.f32.mrf.mxu0
        %v646 = vadd.f32 %v549, %v645
        %v647 = vpop.f32.mrf.mxu0
        %648 = vmatprep.mubr.f32.mxu0 0.0
        %649 = vmatmul.mubr.f32.gmra.mxu0 %v571
        %v650 = vpop.f32.mrf.mxu0
        %v651 = vadd.f32 %v554, %v650
        %v652 = vpop.f32.mrf.mxu0
        %653 = vmatprep.mubr.f32.mxu0 0.0
        %654 = vmatmul.mubr.f32.gmra.mxu0 %v574
        %v655 = vpop.f32.mrf.mxu0
        %v656 = vadd.f32 %v559, %v655
        %v657 = vpop.f32.mrf.mxu0
        %658 = vmatprep.mubr.f32.mxu0 0.0
        %659 = vmatmul.mubr.f32.gmra.mxu0 %v577
        %v660 = vpop.f32.mrf.mxu0
        %v661 = vadd.f32 %v564, %v660
        %v662 = vpop.f32.mrf.mxu0
        %663 = vdwg.mxu0
        %v664 = vmax.f32 %v646, 0.0
        %v665 = vmax.f32 %v651, 0.0
        %v666 = vmax.f32 %v656, 0.0
        %v667 = vmax.f32 %v661, 0.0
        %v668 = vld [vmem:[%s5] sm:$0xff]
        %v669 = vld [vmem:[%s5 + $0x8] sm:$0xff]
        %v670 = vld [vmem:[%s5 + $0x10] sm:$0xff]
        %v671 = vld [vmem:[%s5 + $0x18] sm:$0xff]
        %673 = vset.pattern.permute.xlu0 0
        %674 = vperm.xlu0 %673, %v668
        %v675 = vpop.permute.xlu0 %674
        %678 = vset.pattern.permute.xlu0 0
        %679 = vperm.xlu0 %678, %v669
        %v680 = vpop.permute.xlu0 %679
        %683 = vset.pattern.permute.xlu0 0
        %684 = vperm.xlu0 %683, %v670
        %v685 = vpop.permute.xlu0 %684
        %688 = vset.pattern.permute.xlu0 0
        %689 = vperm.xlu0 %688, %v671
        %v690 = vpop.permute.xlu0 %689
        %v692 = vmul.f32 %v664, %v675
        %v693 = vmul.f32 %v665, %v680
        %v694 = vmul.f32 %v666, %v685
        %v695 = vmul.f32 %v667, %v690
        %v696 = vadd.f32 %v692, %v693
        %v697 = vadd.f32 %v696, %v694
        %v698 = vadd.f32 %v697, %v695
        %v699 = vrot.slane %v698, 4
        %v700 = vadd.f32 %v698, %v699
        %v701 = vrot.slane %v700, 2
        %v702 = vadd.f32 %v700, %v701
        %v703 = vrot.slane %v702, 1
        %v704 = vadd.f32 %v702, %v703
        %v705 = vld [vmem:[#allocation2] sm:$0x1]
        %707 = vset.pattern.permute.xlu0 0
        %708 = vperm.xlu0 %707, %v705
        %v709 = vpop.permute.xlu0 %708
        %v711 = vlaneseq
        %v712 = vshrl.u32 %v711, 7
        %v713 = vsub.s32 0, %v712
        %v714 = vrot.slane %v709, %v713
        %v715 = vadd.f32 %v704, %v714
        %716 = vst [vmem:[%s273] sm:$0x1] %v715
        %s717 = sand.u32 %s183, 1
        %s718 = scalar_lea.sflag [#allocation4], %s717
        %s719 = sand.u32 %s183, 1
        %s720 = scalar_lea.vmem [#allocation3], %s719
        // Predicated region
        $region49: #{tpu_custom_call.1} parent=47 // pred_check
          %p721 = pneg %p193
        $region50: #{tpu_custom_call.1} parent=47 // pred_check_branch
          %723 = sbr.rel (%p721) target = $region52
        $region51: #{tpu_custom_call.1} parent=47 // pred_region
          %s725 = ssub.s32 16, 16
          %726 = vsyncadd %s718, %s725
          %s727 = smul.addr %s23, 16
          %s728 = scalar_lea.hbm %s7, %s727
          %s730 = sshll.u32 %s720, 4
          %s731 = int_to_ptr.vmem [resolvable:$true] %s730
          %733 = dma.vmem_to_hbm [thread:$0]  %s731, 16, %s728, %s718
        $region52: #{tpu_custom_call.1} parent=47 // pred_fallthru
          _
      $region48: #{tpu_custom_call.1} parent=5 // pred_fallthru
        _
      %p734 = scmp.le.s32.totalorder 2, %s18
      // Predicated region
      $region53: #{tpu_custom_call.1} parent=5 // pred_check
        %p735 = pneg %p734
      $region54: #{tpu_custom_call.1} parent=5 // pred_check_branch
        %737 = sbr.rel (%p735) target = $region56
      $region55: #{tpu_custom_call.1} parent=5 // pred_region
        %s738 = ssub.s32 %s18, 2
        // Predicated region
        $region57: #{tpu_custom_call.1} parent=55 // pred_check
          %p739 = pneg %p199
        $region58: #{tpu_custom_call.1} parent=55 // pred_check_branch
          %741 = sbr.rel (%p739) target = $region60
        $region59: #{tpu_custom_call.1} parent=55 // pred_region
          %s742 = sand.u32 %s184, 1
          %s743 = scalar_lea.sflag [#allocation4], %s742
          %s744 = sand.u32 %s184, 1
          %s745 = scalar_lea.vmem [#allocation3], %s744
          %746 = dma.done %s743, 16
        $region60: #{tpu_custom_call.1} parent=55 // pred_fallthru
          _
      $region56: #{tpu_custom_call.1} parent=5 // pred_fallthru
        _
    $region6: #{tpu_custom_call.1} parent=1 // loop_footer
      %s22 = sadd.s32 1, %s18
    $region7: #{tpu_custom_call.1} parent=1 // loop_footer_branch
      %17 = sbr.rel target = $region3
    $region8: #{tpu_custom_call.1} parent=1 // loop_exit
      _
    %747 = vsyncpa [#allocation4], 1
    %s748 = scalar_lea.sflag [#allocation4], 1
    %749 = vsyncpa %s748, 1

</llo_original>
